<compile_context>
chip_gen: v7x
topology: tpu7x:2x2x1
jax: 0.10.0
libtpu: 0.0.40
codegen_flags: <defaults>
</compile_context>

<pallas_src>
import functools

import jax
import jax.numpy as jnp
from jax.experimental import pallas as pl
from jax.experimental.pallas import tpu as pltpu

_LANE = 128
_SUBLANE = 8


def _round_up(x, m):
    return ((x + m - 1) // m) * m


def _cause_specific_kernel(x_ref, w1_ref, b1_ref, w2_ref, b2_ref,
                           w3_ref, b3_ref, w4_ref, b4_ref, out_ref):
    # Layers 1-3: relu(x @ W + b); bf16 MXU operands, fp32 accumulate/epilogue.
    h = jnp.dot(x_ref[...], w1_ref[...], preferred_element_type=jnp.float32) + b1_ref[...]
    h = jnp.maximum(h, 0.0).astype(jnp.bfloat16)

    h = jnp.dot(h, w2_ref[...], preferred_element_type=jnp.float32) + b2_ref[...]
    h = jnp.maximum(h, 0.0).astype(jnp.bfloat16)

    h = jnp.dot(h, w3_ref[...], preferred_element_type=jnp.float32) + b3_ref[...]
    h = jnp.maximum(h, 0.0).astype(jnp.bfloat16)

    # Layer 4 + softmax over the feature axis.  Padded output lanes carry a
    # -1e30 bias, so exp() underflows to exactly 0 and the softmax over the
    # real lanes is unchanged.
    logits = jnp.dot(h, w4_ref[...], preferred_element_type=jnp.float32) + b4_ref[...]
    m = jnp.max(logits, axis=-1, keepdims=True)
    e = jnp.exp(logits - m)
    out_ref[...] = e / jnp.sum(e, axis=-1, keepdims=True)


@functools.partial(jax.jit, static_argnames=("batch_tile",))
def cause_specific_subnetwork(context_vector, last_measurement, params, *, batch_tile=1024):
    """Forward pass. params: w1..w4 (in,out) bf16, b1..b4 (1,out) fp32."""
    B = context_vector.shape[0]
    out_dim = params["w4"].shape[1]
    out_pad = _round_up(out_dim, _LANE)

    # cat(context, last_measurement) once in the wrapper -> single layer-1 matmul.
    x = jnp.concatenate([context_vector, last_measurement], axis=1).astype(jnp.bfloat16)
    in_size = x.shape[1]

    # Batch tiling: pick the biggest tile that fits the request / batch, pad the
    # batch so it divides evenly.
    tb = min(batch_tile, _round_up(B, _SUBLANE))
    tb = _round_up(tb, _SUBLANE)
    b_pad = _round_up(B, tb)
    if b_pad != B:
        x = jnp.pad(x, ((0, b_pad - B), (0, 0)))

    # Lane-dense output: pad layer-4 to a multiple of 128 lanes (zero weight
    # columns, -1e30 bias -> softmax contribution exactly 0).
    w4 = jnp.pad(params["w4"], ((0, 0), (0, out_pad - out_dim)))
    b4 = jnp.pad(params["b4"], ((0, 0), (0, out_pad - out_dim)), constant_values=-1e30)

    w1, b1 = params["w1"], params["b1"]
    w2, b2 = params["w2"], params["b2"]
    w3, b3 = params["w3"], params["b3"]

    grid = (b_pad // tb,)

    def _tile(i):
        return (i, 0)

    def _resident(i):
        return (0, 0)

    in_specs = [
        pl.BlockSpec((tb, in_size), _tile),   # x: tiled over batch
        pl.BlockSpec(w1.shape, _resident),    # weights/biases: VMEM-resident
        pl.BlockSpec(b1.shape, _resident),
        pl.BlockSpec(w2.shape, _resident),
        pl.BlockSpec(b2.shape, _resident),
        pl.BlockSpec(w3.shape, _resident),
        pl.BlockSpec(b3.shape, _resident),
        pl.BlockSpec(w4.shape, _resident),
        pl.BlockSpec(b4.shape, _resident),
    ]
    out_specs = pl.BlockSpec((tb, out_pad), _tile)

    out = pl.pallas_call(
        _cause_specific_kernel,
        out_shape=jax.ShapeDtypeStruct((b_pad, out_pad), jnp.float32),
        grid=grid,
        in_specs=in_specs,
        out_specs=out_specs,
        compiler_params=pltpu.CompilerParams(
            dimension_semantics=("parallel",),  # v7x: shard batch tiles across both TCs
        ),
    )(x, w1, b1, w2, b2, w3, b3, w4, b4)

    return out[:B, :out_dim]


def init_params(key, context_size, hidden_cause_size, input_size, max_length, num_causes):
    """Deterministic init mimicking torch.nn.Linear default (uniform +-1/sqrt(fan_in)).

    Weights stored as (in, out) bf16 (MXU operands); biases as (1, out) fp32.
    """
    in_size = context_size + input_size
    out_size = max_length * num_causes
    dims = [(in_size, 2 * hidden_cause_size),
            (2 * hidden_cause_size, hidden_cause_size),
            (hidden_cause_size, hidden_cause_size // 2),
            (hidden_cause_size // 2, out_size)]
    keys = jax.random.split(key, 2 * len(dims))
    params = {}
    for i, (fan_in, fan_out) in enumerate(dims):
        bound = 1.0 / (fan_in ** 0.5)
        w = jax.random.uniform(keys[2 * i], (fan_in, fan_out), jnp.float32, -bound, bound)
        b = jax.random.uniform(keys[2 * i + 1], (1, fan_out), jnp.float32, -bound, bound)
        params[f"w{i + 1}"] = w.astype(jnp.bfloat16)
        params[f"b{i + 1}"] = b
    return params


def reference_forward(context_vector, last_measurement, params):
    """Pure-JAX reference matching the PyTorch module semantics, at the same
    precision as the kernel (bf16 matmul operands, fp32 accumulate/epilogue)."""
    x = jnp.concatenate([context_vector, last_measurement], axis=1).astype(jnp.bfloat16)

    def dense(h, w, b):
        return jnp.dot(h, w, preferred_element_type=jnp.float32) + b

    h = jax.nn.relu(dense(x, params["w1"], params["b1"])).astype(jnp.bfloat16)
    h = jax.nn.relu(dense(h, params["w2"], params["b2"])).astype(jnp.bfloat16)
    h = jax.nn.relu(dense(h, params["w3"], params["b3"])).astype(jnp.bfloat16)
    logits = dense(h, params["w4"], params["b4"])
    return jax.nn.softmax(logits, axis=1)


if __name__ == "__main__":
    # Small shapes consistent with the module's forward.
    context_size = 16
    input_size = 16
    hidden_cause_size = 32
    max_length = 8
    num_causes = 4
    batch = 40  # deliberately not a multiple of the tile to exercise batch padding

    key = jax.random.PRNGKey(0)
    k_params, k_ctx, k_lm = jax.random.split(key, 3)

    params = init_params(k_params, context_size, hidden_cause_size,
                         input_size, max_length, num_causes)
    context_vector = jax.random.normal(k_ctx, (batch, context_size), jnp.float32)
    last_measurement = jax.random.normal(k_lm, (batch, input_size), jnp.float32)

    # Small batch_tile so the 1-D batch grid actually has >1 step in this demo.
    out = cause_specific_subnetwork(context_vector, last_measurement, params,
                                    batch_tile=16)
    out = jax.block_until_ready(out)

    ref = reference_forward(context_vector, last_measurement, params)
    assert out.shape == (batch, max_length * num_causes)
    assert jnp.allclose(out, ref, atol=1e-3, rtol=1e-3), "mismatch vs reference"
    # softmax rows sum to 1 (padded lanes contribute exactly 0)
    assert jnp.allclose(jnp.sum(out, axis=1), jnp.ones((batch,)), atol=1e-5)

    # Also exercise the default (large) batch tile / single-step grid path.
    out2 = jax.block_until_ready(
        cause_specific_subnetwork(context_vector, last_measurement, params))
    assert jnp.allclose(out2, ref, atol=1e-3, rtol=1e-3), "mismatch vs reference (default tile)"

    print("KERNEL_OK")
</pallas_src>

<mosaic_0001>
module attributes {stable_mosaic.version = 11 : i64} {
  func.func @_cause_specific_kernel(%arg0: i32, %arg1: memref<16x32xbf16, #tpu.memory_space<vmem>>, %arg2: memref<32x64xbf16, #tpu.memory_space<vmem>>, %arg3: memref<1x64xf32, #tpu.memory_space<vmem>>, %arg4: memref<64x32xbf16, #tpu.memory_space<vmem>>, %arg5: memref<1x32xf32, #tpu.memory_space<vmem>>, %arg6: memref<32x16xbf16, #tpu.memory_space<vmem>>, %arg7: memref<1x16xf32, #tpu.memory_space<vmem>>, %arg8: memref<16x128xbf16, #tpu.memory_space<vmem>>, %arg9: memref<1x128xf32, #tpu.memory_space<vmem>>, %arg10: memref<16x128xf32, #tpu.memory_space<vmem>>) attributes {dimension_semantics = [#tpu.dimension_semantics<parallel>], iteration_bounds = array<i64: 3>, scalar_prefetch = 0 : i64, scratch_operands = 0 : i64, tpu.core_type = #tpu.core_type<tc>, window_params = [{transform_indices = @transform_0, window_bounds = array<i64: 16, 32>}, {pipeline_mode = #tpu.pipeline_mode<synchronous>, transform_indices = @transform_1, window_bounds = array<i64: 32, 64>}, {pipeline_mode = #tpu.pipeline_mode<synchronous>, transform_indices = @transform_2, window_bounds = array<i64: 1, 64>}, {pipeline_mode = #tpu.pipeline_mode<synchronous>, transform_indices = @transform_3, window_bounds = array<i64: 64, 32>}, {pipeline_mode = #tpu.pipeline_mode<synchronous>, transform_indices = @transform_4, window_bounds = array<i64: 1, 32>}, {pipeline_mode = #tpu.pipeline_mode<synchronous>, transform_indices = @transform_5, window_bounds = array<i64: 32, 16>}, {pipeline_mode = #tpu.pipeline_mode<synchronous>, transform_indices = @transform_6, window_bounds = array<i64: 1, 16>}, {pipeline_mode = #tpu.pipeline_mode<synchronous>, transform_indices = @transform_7, window_bounds = array<i64: 16, 128>}, {pipeline_mode = #tpu.pipeline_mode<synchronous>, transform_indices = @transform_8, window_bounds = array<i64: 1, 128>}, {transform_indices = @transform_9, window_bounds = array<i64: 16, 128>}]} {
    %c0 = arith.constant 0 : index
    %c0_0 = arith.constant 0 : index
    %0 = vector.load %arg1[%c0, %c0_0] : memref<16x32xbf16, #tpu.memory_space<vmem>>, vector<16x32xbf16>
    %c0_1 = arith.constant 0 : index
    %c0_2 = arith.constant 0 : index
    %1 = vector.load %arg2[%c0_1, %c0_2] : memref<32x64xbf16, #tpu.memory_space<vmem>>, vector<32x64xbf16>
    %cst = arith.constant dense<0.000000e+00> : vector<16x64xf32>
    %2 = tpu.matmul %0, %1, %cst {dimension_numbers = #tpu.dot_dimension_numbers<[1], [0], [0], [1], [0, 0, 1, 1], [], []>} : vector<16x32xbf16>, vector<32x64xbf16>, vector<16x64xf32> -> vector<16x64xf32>
    %c0_3 = arith.constant 0 : index
    %c0_4 = arith.constant 0 : index
    %3 = vector.load %arg3[%c0_3, %c0_4] : memref<1x64xf32, #tpu.memory_space<vmem>>, vector<1x64xf32>
    %4 = vector.broadcast %3 : vector<1x64xf32> to vector<16x64xf32>
    %5 = arith.addf %2, %4 : vector<16x64xf32>
    %cst_5 = arith.constant 0.000000e+00 : f32
    %6 = vector.broadcast %cst_5 : f32 to vector<16x64xf32>
    %7 = arith.maximumf %5, %6 : vector<16x64xf32>
    %8 = arith.truncf %7 : vector<16x64xf32> to vector<16x64xbf16>
    %c0_6 = arith.constant 0 : index
    %c0_7 = arith.constant 0 : index
    %9 = vector.load %arg4[%c0_6, %c0_7] : memref<64x32xbf16, #tpu.memory_space<vmem>>, vector<64x32xbf16>
    %cst_8 = arith.constant dense<0.000000e+00> : vector<16x32xf32>
    %10 = tpu.matmul %8, %9, %cst_8 {dimension_numbers = #tpu.dot_dimension_numbers<[1], [0], [0], [1], [0, 0, 1, 1], [], []>} : vector<16x64xbf16>, vector<64x32xbf16>, vector<16x32xf32> -> vector<16x32xf32>
    %c0_9 = arith.constant 0 : index
    %c0_10 = arith.constant 0 : index
    %11 = vector.load %arg5[%c0_9, %c0_10] : memref<1x32xf32, #tpu.memory_space<vmem>>, vector<1x32xf32>
    %12 = vector.broadcast %11 : vector<1x32xf32> to vector<16x32xf32>
    %13 = arith.addf %10, %12 : vector<16x32xf32>
    %cst_11 = arith.constant 0.000000e+00 : f32
    %14 = vector.broadcast %cst_11 : f32 to vector<16x32xf32>
    %15 = arith.maximumf %13, %14 : vector<16x32xf32>
    %16 = arith.truncf %15 : vector<16x32xf32> to vector<16x32xbf16>
    %c0_12 = arith.constant 0 : index
    %c0_13 = arith.constant 0 : index
    %17 = vector.load %arg6[%c0_12, %c0_13] : memref<32x16xbf16, #tpu.memory_space<vmem>>, vector<32x16xbf16>
    %cst_14 = arith.constant dense<0.000000e+00> : vector<16x16xf32>
    %18 = tpu.matmul %16, %17, %cst_14 {dimension_numbers = #tpu.dot_dimension_numbers<[1], [0], [0], [1], [0, 0, 1, 1], [], []>} : vector<16x32xbf16>, vector<32x16xbf16>, vector<16x16xf32> -> vector<16x16xf32>
    %c0_15 = arith.constant 0 : index
    %c0_16 = arith.constant 0 : index
    %19 = vector.load %arg7[%c0_15, %c0_16] : memref<1x16xf32, #tpu.memory_space<vmem>>, vector<1x16xf32>
    %20 = vector.broadcast %19 : vector<1x16xf32> to vector<16x16xf32>
    %21 = arith.addf %18, %20 : vector<16x16xf32>
    %cst_17 = arith.constant 0.000000e+00 : f32
    %22 = vector.broadcast %cst_17 : f32 to vector<16x16xf32>
    %23 = arith.maximumf %21, %22 : vector<16x16xf32>
    %24 = arith.truncf %23 : vector<16x16xf32> to vector<16x16xbf16>
    %c0_18 = arith.constant 0 : index
    %c0_19 = arith.constant 0 : index
    %25 = vector.load %arg8[%c0_18, %c0_19] : memref<16x128xbf16, #tpu.memory_space<vmem>>, vector<16x128xbf16>
    %cst_20 = arith.constant dense<0.000000e+00> : vector<16x128xf32>
    %26 = tpu.matmul %24, %25, %cst_20 {dimension_numbers = #tpu.dot_dimension_numbers<[1], [0], [0], [1], [0, 0, 1, 1], [], []>} : vector<16x16xbf16>, vector<16x128xbf16>, vector<16x128xf32> -> vector<16x128xf32>
    %c0_21 = arith.constant 0 : index
    %c0_22 = arith.constant 0 : index
    %27 = vector.load %arg9[%c0_21, %c0_22] : memref<1x128xf32, #tpu.memory_space<vmem>>, vector<1x128xf32>
    %28 = vector.broadcast %27 : vector<1x128xf32> to vector<16x128xf32>
    %29 = arith.addf %26, %28 : vector<16x128xf32>
    %cst_23 = arith.constant dense<0xFF800000> : vector<16xf32>
    %30 = vector.multi_reduction <maximumf>, %29, %cst_23 [1] : vector<16x128xf32> to vector<16xf32>
    %31 = vector.shape_cast %30 : vector<16xf32> to vector<16x1xf32>
    %32 = vector.broadcast %31 : vector<16x1xf32> to vector<16x128xf32>
    %33 = arith.subf %29, %32 : vector<16x128xf32>
    %34 = math.exp %33 : vector<16x128xf32>
    %cst_24 = arith.constant dense<0.000000e+00> : vector<16xf32>
    %35 = vector.multi_reduction <add>, %34, %cst_24 [1] : vector<16x128xf32> to vector<16xf32>
    %36 = vector.shape_cast %35 : vector<16xf32> to vector<16x1xf32>
    %37 = vector.broadcast %36 : vector<16x1xf32> to vector<16x128xf32>
    %38 = arith.divf %34, %37 : vector<16x128xf32>
    %c0_25 = arith.constant 0 : index
    %c0_26 = arith.constant 0 : index
    %39 = vector.load %arg10[%c0_25, %c0_26] : memref<16x128xf32, #tpu.memory_space<vmem>>, vector<16x128xf32>
    tpu.vector_store %arg10[%c0_25, %c0_26], %38 {strides = array<i32>} : memref<16x128xf32, #tpu.memory_space<vmem>>, vector<16x128xf32>,
    return
  }
  func.func @transform_0(%arg0: i32) -> (i32, i32) {
    %c0_i32 = arith.constant 0 : i32
    %c0_i32_0 = arith.constant 0 : i32
    return %arg0, %c0_i32 : i32, i32
  }
  func.func @transform_1(%arg0: i32) -> (i32, i32) {
    %c0_i32 = arith.constant 0 : i32
    %c0_i32_0 = arith.constant 0 : i32
    %c0_i32_1 = arith.constant 0 : i32
    return %c0_i32, %c0_i32_0 : i32, i32
  }
  func.func @transform_2(%arg0: i32) -> (i32, i32) {
    %c0_i32 = arith.constant 0 : i32
    %c0_i32_0 = arith.constant 0 : i32
    %c0_i32_1 = arith.constant 0 : i32
    return %c0_i32, %c0_i32_0 : i32, i32
  }
  func.func @transform_3(%arg0: i32) -> (i32, i32) {
    %c0_i32 = arith.constant 0 : i32
    %c0_i32_0 = arith.constant 0 : i32
    %c0_i32_1 = arith.constant 0 : i32
    return %c0_i32, %c0_i32_0 : i32, i32
  }
  func.func @transform_4(%arg0: i32) -> (i32, i32) {
    %c0_i32 = arith.constant 0 : i32
    %c0_i32_0 = arith.constant 0 : i32
    %c0_i32_1 = arith.constant 0 : i32
    return %c0_i32, %c0_i32_0 : i32, i32
  }
  func.func @transform_5(%arg0: i32) -> (i32, i32) {
    %c0_i32 = arith.constant 0 : i32
    %c0_i32_0 = arith.constant 0 : i32
    %c0_i32_1 = arith.constant 0 : i32
    return %c0_i32, %c0_i32_0 : i32, i32
  }
  func.func @transform_6(%arg0: i32) -> (i32, i32) {
    %c0_i32 = arith.constant 0 : i32
    %c0_i32_0 = arith.constant 0 : i32
    %c0_i32_1 = arith.constant 0 : i32
    return %c0_i32, %c0_i32_0 : i32, i32
  }
  func.func @transform_7(%arg0: i32) -> (i32, i32) {
    %c0_i32 = arith.constant 0 : i32
    %c0_i32_0 = arith.constant 0 : i32
    %c0_i32_1 = arith.constant 0 : i32
    return %c0_i32, %c0_i32_0 : i32, i32
  }
  func.func @transform_8(%arg0: i32) -> (i32, i32) {
    %c0_i32 = arith.constant 0 : i32
    %c0_i32_0 = arith.constant 0 : i32
    %c0_i32_1 = arith.constant 0 : i32
    return %c0_i32, %c0_i32_0 : i32, i32
  }
  func.func @transform_9(%arg0: i32) -> (i32, i32) {
    %c0_i32 = arith.constant 0 : i32
    %c0_i32_0 = arith.constant 0 : i32
    return %arg0, %c0_i32 : i32, i32
  }
}

</mosaic_0001>

<llo_original>
// kernel: cause_specific_subnetwork.1
$region0: #{cause_specific_subnetwork.1}
  #allocation0 [shape = 'u32[]', space=smem, size = 0x4, offset = 0x4, fixed_abs, tag = 'smem constant byte address 0x4 - core index']
  #allocation1 [shape = 'u32[144,128]{1,0:T(1,128)}', space=vmem, size = 0x12000, scoped, tag = 'internal scratch']
  %s0 = inlined_call_operand.vmem [shape: bf16[48,32], index: 0, kind: input, shape index: {}]
  %s1 = inlined_call_operand.vmem [shape: bf16[32,64], index: 1, kind: input, shape index: {}]
  %s2 = inlined_call_operand.vmem [shape: f32[1,64], index: 2, kind: input, shape index: {}]
  %s3 = inlined_call_operand.vmem [shape: bf16[64,32], index: 3, kind: input, shape index: {}]
  %s4 = inlined_call_operand.vmem [shape: f32[1,32], index: 4, kind: input, shape index: {}]
  %s5 = inlined_call_operand.vmem [shape: bf16[32,16], index: 5, kind: input, shape index: {}]
  %s6 = inlined_call_operand.vmem [shape: f32[1,16], index: 6, kind: input, shape index: {}]
  %s7 = inlined_call_operand.vmem [shape: bf16[16,128], index: 7, kind: input, shape index: {}]
  %s8 = inlined_call_operand.vmem [shape: f32[1,128], index: 8, kind: input, shape index: {}]
  %s9 = inlined_call_operand.vmem [shape: f32[48,128], index: 9, kind: output, shape index: {}]
  %s10 = sld [smem:[#allocation0]]
  $region69: #{cause_specific_subnetwork.1} parent=0
    _
  %s12 = ssub.s32 1, %s10
  %s13 = scalar_select 0, %s12, %s10
  loop: start=0, step=1, limit=5
  $region2: #{cause_specific_subnetwork.1} parent=0 // loop_pre_header
    _
  $region3: #{cause_specific_subnetwork.1} parent=0 // loop_header
    %s15 = sphi 0, %s19
    %p16 = scmp.ge.s32.totalorder %s15, 5
    %s25 = sphi 0, %s27
    %s28 = sphi 0, %s25
    %s29 = sphi 0, %s28
    %s45 = sphi 0, %s29
    %s49 = sphi 0, %s49
    %s51 = sphi 0, %s49
    %s52 = sphi 0, %s51
    %s66 = sphi 0, %s52
    %s70 = sphi 0, %s70
    %s72 = sphi 0, %s70
    %s73 = sphi 0, %s72
    %s87 = sphi 0, %s73
    %s91 = sphi 0, %s91
    %s93 = sphi 0, %s91
    %s94 = sphi 0, %s93
    %s108 = sphi 0, %s94
    %s112 = sphi 0, %s112
    %s114 = sphi 0, %s112
    %s115 = sphi 0, %s114
    %s129 = sphi 0, %s115
    %s133 = sphi 0, %s133
    %s135 = sphi 0, %s133
    %s136 = sphi 0, %s135
    %s150 = sphi 0, %s136
    %s154 = sphi 0, %s154
    %s156 = sphi 0, %s154
    %s157 = sphi 0, %s156
    %s171 = sphi 0, %s157
    %s175 = sphi 0, %s175
    %s177 = sphi 0, %s175
    %s178 = sphi 0, %s177
    %s192 = sphi 0, %s178
    %s196 = sphi 0, %s196
    %s198 = sphi 0, %s196
    %s199 = sphi 0, %s198
    %s213 = sphi 0, %s199
    %s219 = sphi 0, %s221
    %s222 = sphi 0, %s219
    %s223 = sphi 0, %s222
    %s239 = sphi 0, %s223
  $region4: #{cause_specific_subnetwork.1} parent=0 // loop_header_branch
    %18 = sbr.rel (%p16) target = $region8
  $region5: #{cause_specific_subnetwork.1} parent=0 // loop_body
    %s20 = ssub.s32 %s15, 1
    %s21 = ssub.s32 %s15, 2
    %s22 = sadd.s32 %s15, 1
    %s23 = ssub.s32 %s15, %s22
    %p24 = scmp.eq.s32.totalorder %s23, 0
    %s26 = sadd.s32 %s25, 1
    %s27 = scalar_select %p24, %s25, %s26
    %p30 = pneg %p24
    %p31 = scmp.eq.s32.totalorder %s15, 2
    %p32 = por %p30, %p31
    %p33 = scmp.ne.s32.totalorder %s25, %s28
    %p34 = scmp.eq.s32.totalorder %s15, 0
    %p35 = por %p33, %p34
    %p36 = scmp.ne.s32.totalorder %s25, %s28
    %p37 = scmp.eq.s32.totalorder %s20, 2
    %p38 = por %p36, %p37
    %p39 = scmp.ne.s32.totalorder %s28, %s29
    %p40 = scmp.eq.s32.totalorder %s20, 0
    %p41 = por %p39, %p40
    %p42 = scmp.ne.s32.totalorder %s28, %s29
    %p43 = scmp.eq.s32.totalorder %s21, 2
    %p44 = por %p42, %p43
    %p46 = scmp.ne.s32.totalorder %s29, %s45
    %p47 = scmp.eq.s32.totalorder %s21, 0
    %p48 = por %p46, %p47
    %s50 = sadd.s32 %s49, 1
    %p53 = scmp.eq.s32.totalorder %s15, 2
    %p54 = scmp.ne.s32.totalorder %s49, %s51
    %p55 = scmp.eq.s32.totalorder %s15, 0
    %p56 = por %p54, %p55
    %p57 = scmp.ne.s32.totalorder %s49, %s51
    %p58 = scmp.eq.s32.totalorder %s20, 2
    %p59 = por %p57, %p58
    %p60 = scmp.ne.s32.totalorder %s51, %s52
    %p61 = scmp.eq.s32.totalorder %s20, 0
    %p62 = por %p60, %p61
    %p63 = scmp.ne.s32.totalorder %s51, %s52
    %p64 = scmp.eq.s32.totalorder %s21, 2
    %p65 = por %p63, %p64
    %p67 = scmp.ne.s32.totalorder %s52, %s66
    %p68 = scmp.eq.s32.totalorder %s21, 0
    %p69 = por %p67, %p68
    %s71 = sadd.s32 %s70, 1
    %p74 = scmp.eq.s32.totalorder %s15, 2
    %p75 = scmp.ne.s32.totalorder %s70, %s72
    %p76 = scmp.eq.s32.totalorder %s15, 0
    %p77 = por %p75, %p76
    %p78 = scmp.ne.s32.totalorder %s70, %s72
    %p79 = scmp.eq.s32.totalorder %s20, 2
    %p80 = por %p78, %p79
    %p81 = scmp.ne.s32.totalorder %s72, %s73
    %p82 = scmp.eq.s32.totalorder %s20, 0
    %p83 = por %p81, %p82
    %p84 = scmp.ne.s32.totalorder %s72, %s73
    %p85 = scmp.eq.s32.totalorder %s21, 2
    %p86 = por %p84, %p85
    %p88 = scmp.ne.s32.totalorder %s73, %s87
    %p89 = scmp.eq.s32.totalorder %s21, 0
    %p90 = por %p88, %p89
    %s92 = sadd.s32 %s91, 1
    %p95 = scmp.eq.s32.totalorder %s15, 2
    %p96 = scmp.ne.s32.totalorder %s91, %s93
    %p97 = scmp.eq.s32.totalorder %s15, 0
    %p98 = por %p96, %p97
    %p99 = scmp.ne.s32.totalorder %s91, %s93
    %p100 = scmp.eq.s32.totalorder %s20, 2
    %p101 = por %p99, %p100
    %p102 = scmp.ne.s32.totalorder %s93, %s94
    %p103 = scmp.eq.s32.totalorder %s20, 0
    %p104 = por %p102, %p103
    %p105 = scmp.ne.s32.totalorder %s93, %s94
    %p106 = scmp.eq.s32.totalorder %s21, 2
    %p107 = por %p105, %p106
    %p109 = scmp.ne.s32.totalorder %s94, %s108
    %p110 = scmp.eq.s32.totalorder %s21, 0
    %p111 = por %p109, %p110
    %s113 = sadd.s32 %s112, 1
    %p116 = scmp.eq.s32.totalorder %s15, 2
    %p117 = scmp.ne.s32.totalorder %s112, %s114
    %p118 = scmp.eq.s32.totalorder %s15, 0
    %p119 = por %p117, %p118
    %p120 = scmp.ne.s32.totalorder %s112, %s114
    %p121 = scmp.eq.s32.totalorder %s20, 2
    %p122 = por %p120, %p121
    %p123 = scmp.ne.s32.totalorder %s114, %s115
    %p124 = scmp.eq.s32.totalorder %s20, 0
    %p125 = por %p123, %p124
    %p126 = scmp.ne.s32.totalorder %s114, %s115
    %p127 = scmp.eq.s32.totalorder %s21, 2
    %p128 = por %p126, %p127
    %p130 = scmp.ne.s32.totalorder %s115, %s129
    %p131 = scmp.eq.s32.totalorder %s21, 0
    %p132 = por %p130, %p131
    %s134 = sadd.s32 %s133, 1
    %p137 = scmp.eq.s32.totalorder %s15, 2
    %p138 = scmp.ne.s32.totalorder %s133, %s135
    %p139 = scmp.eq.s32.totalorder %s15, 0
    %p140 = por %p138, %p139
    %p141 = scmp.ne.s32.totalorder %s133, %s135
    %p142 = scmp.eq.s32.totalorder %s20, 2
    %p143 = por %p141, %p142
    %p144 = scmp.ne.s32.totalorder %s135, %s136
    %p145 = scmp.eq.s32.totalorder %s20, 0
    %p146 = por %p144, %p145
    %p147 = scmp.ne.s32.totalorder %s135, %s136
    %p148 = scmp.eq.s32.totalorder %s21, 2
    %p149 = por %p147, %p148
    %p151 = scmp.ne.s32.totalorder %s136, %s150
    %p152 = scmp.eq.s32.totalorder %s21, 0
    %p153 = por %p151, %p152
    %s155 = sadd.s32 %s154, 1
    %p158 = scmp.eq.s32.totalorder %s15, 2
    %p159 = scmp.ne.s32.totalorder %s154, %s156
    %p160 = scmp.eq.s32.totalorder %s15, 0
    %p161 = por %p159, %p160
    %p162 = scmp.ne.s32.totalorder %s154, %s156
    %p163 = scmp.eq.s32.totalorder %s20, 2
    %p164 = por %p162, %p163
    %p165 = scmp.ne.s32.totalorder %s156, %s157
    %p166 = scmp.eq.s32.totalorder %s20, 0
    %p167 = por %p165, %p166
    %p168 = scmp.ne.s32.totalorder %s156, %s157
    %p169 = scmp.eq.s32.totalorder %s21, 2
    %p170 = por %p168, %p169
    %p172 = scmp.ne.s32.totalorder %s157, %s171
    %p173 = scmp.eq.s32.totalorder %s21, 0
    %p174 = por %p172, %p173
    %s176 = sadd.s32 %s175, 1
    %p179 = scmp.eq.s32.totalorder %s15, 2
    %p180 = scmp.ne.s32.totalorder %s175, %s177
    %p181 = scmp.eq.s32.totalorder %s15, 0
    %p182 = por %p180, %p181
    %p183 = scmp.ne.s32.totalorder %s175, %s177
    %p184 = scmp.eq.s32.totalorder %s20, 2
    %p185 = por %p183, %p184
    %p186 = scmp.ne.s32.totalorder %s177, %s178
    %p187 = scmp.eq.s32.totalorder %s20, 0
    %p188 = por %p186, %p187
    %p189 = scmp.ne.s32.totalorder %s177, %s178
    %p190 = scmp.eq.s32.totalorder %s21, 2
    %p191 = por %p189, %p190
    %p193 = scmp.ne.s32.totalorder %s178, %s192
    %p194 = scmp.eq.s32.totalorder %s21, 0
    %p195 = por %p193, %p194
    %s197 = sadd.s32 %s196, 1
    %p200 = scmp.eq.s32.totalorder %s15, 2
    %p201 = scmp.ne.s32.totalorder %s196, %s198
    %p202 = scmp.eq.s32.totalorder %s15, 0
    %p203 = por %p201, %p202
    %p204 = scmp.ne.s32.totalorder %s196, %s198
    %p205 = scmp.eq.s32.totalorder %s20, 2
    %p206 = por %p204, %p205
    %p207 = scmp.ne.s32.totalorder %s198, %s199
    %p208 = scmp.eq.s32.totalorder %s20, 0
    %p209 = por %p207, %p208
    %p210 = scmp.ne.s32.totalorder %s198, %s199
    %p211 = scmp.eq.s32.totalorder %s21, 2
    %p212 = por %p210, %p211
    %p214 = scmp.ne.s32.totalorder %s199, %s213
    %p215 = scmp.eq.s32.totalorder %s21, 0
    %p216 = por %p214, %p215
    %s217 = ssub.s32 %s15, %s22
    %p218 = scmp.eq.s32.totalorder %s217, 0
    %s220 = sadd.s32 %s219, 1
    %s221 = scalar_select %p218, %s219, %s220
    %p224 = pneg %p218
    %p225 = scmp.eq.s32.totalorder %s15, 2
    %p226 = por %p224, %p225
    %p227 = scmp.ne.s32.totalorder %s219, %s222
    %p228 = scmp.eq.s32.totalorder %s15, 0
    %p229 = por %p227, %p228
    %p230 = scmp.ne.s32.totalorder %s219, %s222
    %p231 = scmp.eq.s32.totalorder %s20, 2
    %p232 = por %p230, %p231
    %p233 = scmp.ne.s32.totalorder %s222, %s223
    %p234 = scmp.eq.s32.totalorder %s20, 0
    %p235 = por %p233, %p234
    %p236 = scmp.ne.s32.totalorder %s222, %s223
    %p237 = scmp.eq.s32.totalorder %s21, 2
    %p238 = por %p236, %p237
    %p240 = scmp.ne.s32.totalorder %s223, %s239
    %p241 = scmp.eq.s32.totalorder %s21, 0
    %p242 = por %p240, %p241
    %p243 = scmp.le.s32.totalorder 1, %s15
    %p244 = scmp.lt.s32.totalorder %s15, 4
    %p245 = pnand %p243, %p244
    %p246 = pneg %p245
    // Predicated region
    $region9: #{cause_specific_subnetwork.1} parent=5 // pred_check
      _
    $region10: #{cause_specific_subnetwork.1} parent=5 // pred_check_branch
      %248 = sbr.rel (%p245) target = $region12
    $region11: #{cause_specific_subnetwork.1} parent=5 // pred_region
      %s249 = ssub.s32 %s15, 1
      // Predicated region
      $region13: #{cause_specific_subnetwork.1} parent=11 // pred_check
        %p250 = pneg %p62
      $region14: #{cause_specific_subnetwork.1} parent=11 // pred_check_branch
        %252 = sbr.rel (%p250) target = $region16
      $region15: #{cause_specific_subnetwork.1} parent=11 // pred_region
        _
      $region16: #{cause_specific_subnetwork.1} parent=11 // pred_fallthru
        _
      // Predicated region
      $region17: #{cause_specific_subnetwork.1} parent=11 // pred_check
        %p253 = pneg %p83
      $region18: #{cause_specific_subnetwork.1} parent=11 // pred_check_branch
        %255 = sbr.rel (%p253) target = $region20
      $region19: #{cause_specific_subnetwork.1} parent=11 // pred_region
        _
      $region20: #{cause_specific_subnetwork.1} parent=11 // pred_fallthru
        _
      // Predicated region
      $region21: #{cause_specific_subnetwork.1} parent=11 // pred_check
        %p256 = pneg %p104
      $region22: #{cause_specific_subnetwork.1} parent=11 // pred_check_branch
        %258 = sbr.rel (%p256) target = $region24
      $region23: #{cause_specific_subnetwork.1} parent=11 // pred_region
        _
      $region24: #{cause_specific_subnetwork.1} parent=11 // pred_fallthru
        _
      // Predicated region
      $region25: #{cause_specific_subnetwork.1} parent=11 // pred_check
        %p259 = pneg %p125
      $region26: #{cause_specific_subnetwork.1} parent=11 // pred_check_branch
        %261 = sbr.rel (%p259) target = $region28
      $region27: #{cause_specific_subnetwork.1} parent=11 // pred_region
        _
      $region28: #{cause_specific_subnetwork.1} parent=11 // pred_fallthru
        _
      // Predicated region
      $region29: #{cause_specific_subnetwork.1} parent=11 // pred_check
        %p262 = pneg %p146
      $region30: #{cause_specific_subnetwork.1} parent=11 // pred_check_branch
        %264 = sbr.rel (%p262) target = $region32
      $region31: #{cause_specific_subnetwork.1} parent=11 // pred_region
        _
      $region32: #{cause_specific_subnetwork.1} parent=11 // pred_fallthru
        _
      // Predicated region
      $region33: #{cause_specific_subnetwork.1} parent=11 // pred_check
        %p265 = pneg %p167
      $region34: #{cause_specific_subnetwork.1} parent=11 // pred_check_branch
        %267 = sbr.rel (%p265) target = $region36
      $region35: #{cause_specific_subnetwork.1} parent=11 // pred_region
        _
      $region36: #{cause_specific_subnetwork.1} parent=11 // pred_fallthru
        _
      // Predicated region
      $region37: #{cause_specific_subnetwork.1} parent=11 // pred_check
        %p268 = pneg %p188
      $region38: #{cause_specific_subnetwork.1} parent=11 // pred_check_branch
        %270 = sbr.rel (%p268) target = $region40
      $region39: #{cause_specific_subnetwork.1} parent=11 // pred_region
        _
      $region40: #{cause_specific_subnetwork.1} parent=11 // pred_fallthru
        _
      // Predicated region
      $region41: #{cause_specific_subnetwork.1} parent=11 // pred_check
        %p271 = pneg %p209
      $region42: #{cause_specific_subnetwork.1} parent=11 // pred_check_branch
        %273 = sbr.rel (%p271) target = $region44
      $region43: #{cause_specific_subnetwork.1} parent=11 // pred_region
        _
      $region44: #{cause_specific_subnetwork.1} parent=11 // pred_fallthru
        _
    $region12: #{cause_specific_subnetwork.1} parent=5 // pred_fallthru
      _
    %p274 = scmp.lt.s32.totalorder %s15, 3
    // Predicated region
    $region45: #{cause_specific_subnetwork.1} parent=5 // pred_check
      %p275 = pneg %p274
    $region46: #{cause_specific_subnetwork.1} parent=5 // pred_check_branch
      %277 = sbr.rel (%p275) target = $region48
    $region47: #{cause_specific_subnetwork.1} parent=5 // pred_region
      // Predicated region
      $region49: #{cause_specific_subnetwork.1} parent=47 // pred_check
        %p278 = pneg %p35
      $region50: #{cause_specific_subnetwork.1} parent=47 // pred_check_branch
        %280 = sbr.rel (%p278) target = $region52
      $region51: #{cause_specific_subnetwork.1} parent=47 // pred_region
        %s281 = smul.u32 2, %s15
        %p282 = scmp.lt.s32.totalorder %s281, 5
        %s283 = scalar_select %p282, %s281, 5
        %s284 = smul.addr %s283, 4
        %s285 = scalar_lea.vmem %s0, %s284
        %s286 = smul.u32 2, %s15
      $region52: #{cause_specific_subnetwork.1} parent=47 // pred_fallthru
        _
    $region48: #{cause_specific_subnetwork.1} parent=5 // pred_fallthru
      _
    %p287 = scmp.le.s32.totalorder 1, %s15
    %p288 = scmp.lt.s32.totalorder %s15, 4
    %p289 = pnand %p287, %p288
    %p290 = pneg %p289
    // Predicated region
    $region53: #{cause_specific_subnetwork.1} parent=5 // pred_check
      _
    $region54: #{cause_specific_subnetwork.1} parent=5 // pred_check_branch
      %292 = sbr.rel (%p289) target = $region56
    $region55: #{cause_specific_subnetwork.1} parent=5 // pred_region
      %s293 = ssub.s32 %s15, 1
      %s294 = smul.u32 2, %s20
      %p295 = scmp.lt.s32.totalorder %s294, 5
      %s296 = scalar_select %p295, %s294, 5
      %s297 = smul.addr %s296, 4
      %s298 = scalar_lea.vmem %s0, %s297
      %p299 = pneg %p41
      %p300 = pneg %p38
      %p301 = pneg %p62
      %p302 = pneg %p59
      %p303 = pneg %p83
      %p304 = pneg %p80
      %p305 = pneg %p104
      %p306 = pneg %p101
      %p307 = pneg %p125
      %p308 = pneg %p122
      %p309 = pneg %p146
      %p310 = pneg %p143
      %p311 = pneg %p167
      %p312 = pneg %p164
      %p313 = pneg %p188
      %p314 = pneg %p185
      %p315 = pneg %p209
      %p316 = pneg %p206
      %p317 = pneg %p235
      %p318 = pneg %p232
      %s319 = smul.u32 2, %s20
      %p320 = scmp.lt.s32.totalorder %s319, 5
      %s321 = scalar_select %p320, %s319, 5
      %s322 = smul.addr %s321, 8
      %s323 = scalar_lea.vmem %s9, %s322
      %s324 = smul.u32 2, %s20
      %p325 = scmp.lt.s32.totalorder %s324, 5
      %s326 = scalar_select %p325, %s324, 5
      %s327 = smul.addr %s326, 4
      %s328 = scalar_lea.vmem %s0, %s327
      %s329 = smul.u32 2, %s20
      %s330 = smul.u32 2, %s20
      %p331 = scmp.lt.s32.totalorder %s330, 5
      %s332 = scalar_select %p331, %s330, 5
      %s333 = smul.addr %s332, 8
      %s334 = scalar_lea.vmem %s9, %s333
      %s335 = smul.u32 2, %s20
      %v337 = vld [vmem:[%s328] sm:$0xf]
      %v338 = vld [vmem:[%s328 + $0x4] sm:$0xf]
      %v339 = vld [vmem:[%s1] sm:$0xf]
      %v340 = vld [vmem:[%s1 + $0x4] sm:$0xf]
      %v341 = vld [vmem:[%s1 + $0x8] sm:$0xf]
      %v342 = vld [vmem:[%s1 + $0xc] sm:$0xf]
      %v343 = vld [vmem:[%s2] sm:$0x1]
      %v345 = vlaneseq
      %v346 = vshrl.u32 %v345, 7
      %v347 = vsub.s32 0, %v346
      %v348 = vrot.slane %v343, %v347
      %v352 = vunpack.c.l.b16 %v337
      %v353 = vunpack.c.l.b16 %v338
      %v354 = vpack.c.b16 %v353, %v352
      %v359 = vunpack.c.l.b16 %v339
      %v360 = vunpack.c.l.b16 %v340
      %v361 = vunpack.c.l.b16 %v341
      %v362 = vunpack.c.l.b16 %v342
      %v363 = vpack.c.b16 %v360, %v359
      %v364 = vpack.c.b16 %v362, %v361
      %vm367 = vcmask 261120
      %v369 = vsel %vm367, %v354, 0
      %371 = vmatprep.subr.bf16.mxu0 0
      %372 = vmatpush1.bf16.msra.mxu0 %v363
      %373 = vmatprep.subr.bf16.mxu0 0
      %374 = vmatpush1.bf16.msra.mxu0 %v364
      %375 = vmatprep.subr.bf16.mxu0 0
      %376 = vmatpush1.bf16.msra.mxu0 0
      %377 = vmatprep.subr.bf16.mxu0 0
      %378 = vmatpush1.bf16.msra.mxu0 0
      %379 = vmatprep.subr.bf16.mxu0 0
      %380 = vmatpush1.bf16.msra.mxu0 0
      %381 = vmatprep.subr.bf16.mxu0 0
      %382 = vmatpush1.bf16.msra.mxu0 0
      %383 = vmatprep.subr.bf16.mxu0 0
      %384 = vmatpush1.bf16.msra.mxu0 0
      %385 = vmatprep.subr.bf16.mxu0 0
      %386 = vmatpush1.bf16.msra.mxu0 0
      %387 = vmatprep.subr.bf16.mxu0 0
      %388 = vmatpush1.bf16.msra.mxu0 0
      %389 = vmatprep.subr.bf16.mxu0 0
      %390 = vmatpush1.bf16.msra.mxu0 0
      %391 = vmatprep.subr.bf16.mxu0 0
      %392 = vmatpush1.bf16.msra.mxu0 0
      %393 = vmatprep.subr.bf16.mxu0 0
      %394 = vmatpush1.bf16.msra.mxu0 0
      %395 = vmatprep.subr.bf16.mxu0 0
      %396 = vmatpush1.bf16.msra.mxu0 0
      %397 = vmatprep.subr.bf16.mxu0 0
      %398 = vmatpush1.bf16.msra.mxu0 0
      %399 = vmatprep.subr.bf16.mxu0 0
      %400 = vmatpush1.bf16.msra.mxu0 0
      %401 = vmatprep.subr.bf16.mxu0 0
      %402 = vmatpush1.bf16.msra.mxu0 0
      %403 = vmatprep.mubr.bf16.mxu0 0
      %404 = vmatmul.mubr.bf16.gmra.mrb[0].mxu0 %v369
      %v405 = vpop.f32.mrb[0].mxu0
      %v406 = vadd.f32 %v348, %v405
      %v407 = vpop.f32.mrb[0].mxu0
      %v408 = vpop.f32.mrb[0].mxu0
      %v409 = vadd.f32 %v348, %v408
      %v410 = vpop.f32.mrb[0].mxu0
      %411 = vdwg.mxu0
      %v412 = vmax.f32 %v406, 0.0
      %v413 = vmax.f32 %v409, 0.0
      %v414 = vpack.c.bf16 %v413, %v412
      %v415 = vld [vmem:[%s3] sm:$0xf]
      %v416 = vld [vmem:[%s3 + $0x4] sm:$0xf]
      %v417 = vld [vmem:[%s3 + $0x8] sm:$0xf]
      %v418 = vld [vmem:[%s3 + $0xc] sm:$0xf]
      %v419 = vld [vmem:[%s3 + $0x10] sm:$0xf]
      %v420 = vld [vmem:[%s3 + $0x14] sm:$0xf]
      %v421 = vld [vmem:[%s3 + $0x18] sm:$0xf]
      %v422 = vld [vmem:[%s3 + $0x1c] sm:$0xf]
      %v423 = vld [vmem:[%s4] sm:$0x1]
      %v425 = vlaneseq
      %v426 = vshrl.u32 %v425, 7
      %v427 = vsub.s32 0, %v426
      %v428 = vrot.slane %v423, %v427
      %v438 = vunpack.c.l.b16 %v415
      %v439 = vunpack.c.l.b16 %v416
      %v440 = vunpack.c.l.b16 %v417
      %v441 = vunpack.c.l.b16 %v418
      %v442 = vunpack.c.l.b16 %v419
      %v443 = vunpack.c.l.b16 %v420
      %v444 = vunpack.c.l.b16 %v421
      %v445 = vunpack.c.l.b16 %v422
      %v446 = vpack.c.b16 %v439, %v438
      %v447 = vpack.c.b16 %v441, %v440
      %v448 = vpack.c.b16 %v443, %v442
      %v449 = vpack.c.b16 %v445, %v444
      %vm454 = vcmask 523264
      %v456 = vsel %vm454, %v414, 0
      %458 = vmatprep.subr.bf16.mxu0 0
      %459 = vmatpush1.bf16.msra.mxu0 %v446
      %460 = vmatprep.subr.bf16.mxu0 0
      %461 = vmatpush1.bf16.msra.mxu0 %v447
      %462 = vmatprep.subr.bf16.mxu0 0
      %463 = vmatpush1.bf16.msra.mxu0 %v448
      %464 = vmatprep.subr.bf16.mxu0 0
      %465 = vmatpush1.bf16.msra.mxu0 %v449
      %466 = vmatprep.subr.bf16.mxu0 0
      %467 = vmatpush1.bf16.msra.mxu0 0
      %468 = vmatprep.subr.bf16.mxu0 0
      %469 = vmatpush1.bf16.msra.mxu0 0
      %470 = vmatprep.subr.bf16.mxu0 0
      %471 = vmatpush1.bf16.msra.mxu0 0
      %472 = vmatprep.subr.bf16.mxu0 0
      %473 = vmatpush1.bf16.msra.mxu0 0
      %474 = vmatprep.subr.bf16.mxu0 0
      %475 = vmatpush1.bf16.msra.mxu0 0
      %476 = vmatprep.subr.bf16.mxu0 0
      %477 = vmatpush1.bf16.msra.mxu0 0
      %478 = vmatprep.subr.bf16.mxu0 0
      %479 = vmatpush1.bf16.msra.mxu0 0
      %480 = vmatprep.subr.bf16.mxu0 0
      %481 = vmatpush1.bf16.msra.mxu0 0
      %482 = vmatprep.subr.bf16.mxu0 0
      %483 = vmatpush1.bf16.msra.mxu0 0
      %484 = vmatprep.subr.bf16.mxu0 0
      %485 = vmatpush1.bf16.msra.mxu0 0
      %486 = vmatprep.subr.bf16.mxu0 0
      %487 = vmatpush1.bf16.msra.mxu0 0
      %488 = vmatprep.subr.bf16.mxu0 0
      %489 = vmatpush1.bf16.msra.mxu0 0
      %490 = vmatprep.mubr.bf16.mxu0 0
      %491 = vmatmul.mubr.bf16.gmra.mrb[0].mxu0 %v456
      %v492 = vpop.f32.mrb[0].mxu0
      %v493 = vadd.f32 %v428, %v492
      %v494 = vpop.f32.mrb[0].mxu0
      %v495 = vpop.f32.mrb[0].mxu0
      %v496 = vadd.f32 %v428, %v495
      %v497 = vpop.f32.mrb[0].mxu0
      %498 = vdwg.mxu0
      %v499 = vmax.f32 %v493, 0.0
      %v500 = vmax.f32 %v496, 0.0
      %v501 = vpack.c.bf16 %v500, %v499
      %v502 = vld [vmem:[%s5] sm:$0xf]
      %v503 = vld [vmem:[%s5 + $0x4] sm:$0xf]
      %v504 = vld [vmem:[%s5 + $0x8] sm:$0xf]
      %v505 = vld [vmem:[%s5 + $0xc] sm:$0xf]
      %v506 = vld [vmem:[%s6] sm:$0x1]
      %v508 = vlaneseq
      %v509 = vshrl.u32 %v508, 7
      %v510 = vsub.s32 0, %v509
      %v511 = vrot.slane %v506, %v510
      %v517 = vunpack.c.l.b16 %v502
      %v518 = vunpack.c.l.b16 %v503
      %v519 = vunpack.c.l.b16 %v504
      %v520 = vunpack.c.l.b16 %v505
      %v521 = vpack.c.b16 %v518, %v517
      %v522 = vpack.c.b16 %v520, %v519
      %v526 = vsel %vm367, %v501, 0
      %528 = vmatprep.subr.bf16.mxu0 0
      %529 = vmatpush1.bf16.msra.mxu0 %v521
      %530 = vmatprep.subr.bf16.mxu0 0
      %531 = vmatpush1.bf16.msra.mxu0 %v522
      %532 = vmatprep.subr.bf16.mxu0 0
      %533 = vmatpush1.bf16.msra.mxu0 0
      %534 = vmatprep.subr.bf16.mxu0 0
      %535 = vmatpush1.bf16.msra.mxu0 0
      %536 = vmatprep.subr.bf16.mxu0 0
      %537 = vmatpush1.bf16.msra.mxu0 0
      %538 = vmatprep.subr.bf16.mxu0 0
      %539 = vmatpush1.bf16.msra.mxu0 0
      %540 = vmatprep.subr.bf16.mxu0 0
      %541 = vmatpush1.bf16.msra.mxu0 0
      %542 = vmatprep.subr.bf16.mxu0 0
      %543 = vmatpush1.bf16.msra.mxu0 0
      %544 = vmatprep.subr.bf16.mxu0 0
      %545 = vmatpush1.bf16.msra.mxu0 0
      %546 = vmatprep.subr.bf16.mxu0 0
      %547 = vmatpush1.bf16.msra.mxu0 0
      %548 = vmatprep.subr.bf16.mxu0 0
      %549 = vmatpush1.bf16.msra.mxu0 0
      %550 = vmatprep.subr.bf16.mxu0 0
      %551 = vmatpush1.bf16.msra.mxu0 0
      %552 = vmatprep.subr.bf16.mxu0 0
      %553 = vmatpush1.bf16.msra.mxu0 0
      %554 = vmatprep.subr.bf16.mxu0 0
      %555 = vmatpush1.bf16.msra.mxu0 0
      %556 = vmatprep.subr.bf16.mxu0 0
      %557 = vmatpush1.bf16.msra.mxu0 0
      %558 = vmatprep.subr.bf16.mxu0 0
      %559 = vmatpush1.bf16.msra.mxu0 0
      %560 = vmatprep.mubr.bf16.mxu0 0
      %561 = vmatmul.mubr.bf16.gmra.mrb[0].mxu0 %v526
      %v562 = vpop.f32.mrb[0].mxu0
      %v563 = vadd.f32 %v511, %v562
      %v564 = vpop.f32.mrb[0].mxu0
      %v565 = vpop.f32.mrb[0].mxu0
      %v566 = vadd.f32 %v511, %v565
      %v567 = vpop.f32.mrb[0].mxu0
      %568 = vdwg.mxu0
      %v569 = vmax.f32 %v563, 0.0
      %v570 = vmax.f32 %v566, 0.0
      %v571 = vpack.c.bf16 %v570, %v569
      %v572 = vld [vmem:[%s7] sm:$0xf]
      %v573 = vld [vmem:[%s7 + $0x4] sm:$0xf]
      %v574 = vld [vmem:[%s8] sm:$0x1]
      %v576 = vlaneseq
      %v577 = vshrl.u32 %v576, 7
      %v578 = vsub.s32 0, %v577
      %v579 = vrot.slane %v574, %v578
      %v583 = vunpack.c.l.b16 %v572
      %v584 = vunpack.c.l.b16 %v573
      %v585 = vpack.c.b16 %v584, %v583
      %vm587 = vcmask 130048
      %v589 = vsel %vm587, %v571, 0
      %591 = vmatprep.subr.bf16.mxu0 0
      %592 = vmatpush1.bf16.msra.mxu0 %v585
      %593 = vmatprep.subr.bf16.mxu0 0
      %594 = vmatpush1.bf16.msra.mxu0 0
      %595 = vmatprep.subr.bf16.mxu0 0
      %596 = vmatpush1.bf16.msra.mxu0 0
      %597 = vmatprep.subr.bf16.mxu0 0
      %598 = vmatpush1.bf16.msra.mxu0 0
      %599 = vmatprep.subr.bf16.mxu0 0
      %600 = vmatpush1.bf16.msra.mxu0 0
      %601 = vmatprep.subr.bf16.mxu0 0
      %602 = vmatpush1.bf16.msra.mxu0 0
      %603 = vmatprep.subr.bf16.mxu0 0
      %604 = vmatpush1.bf16.msra.mxu0 0
      %605 = vmatprep.subr.bf16.mxu0 0
      %606 = vmatpush1.bf16.msra.mxu0 0
      %607 = vmatprep.subr.bf16.mxu0 0
      %608 = vmatpush1.bf16.msra.mxu0 0
      %609 = vmatprep.subr.bf16.mxu0 0
      %610 = vmatpush1.bf16.msra.mxu0 0
      %611 = vmatprep.subr.bf16.mxu0 0
      %612 = vmatpush1.bf16.msra.mxu0 0
      %613 = vmatprep.subr.bf16.mxu0 0
      %614 = vmatpush1.bf16.msra.mxu0 0
      %615 = vmatprep.subr.bf16.mxu0 0
      %616 = vmatpush1.bf16.msra.mxu0 0
      %617 = vmatprep.subr.bf16.mxu0 0
      %618 = vmatpush1.bf16.msra.mxu0 0
      %619 = vmatprep.subr.bf16.mxu0 0
      %620 = vmatpush1.bf16.msra.mxu0 0
      %621 = vmatprep.subr.bf16.mxu0 0
      %622 = vmatpush1.bf16.msra.mxu0 0
      %623 = vmatprep.mubr.bf16.mxu0 0
      %624 = vmatmul.mubr.bf16.gmra.mrb[0].mxu0 %v589
      %v625 = vpop.f32.mrb[0].mxu0
      %v626 = vadd.f32 %v579, %v625
      %v627 = vpop.f32.mrb[0].mxu0
      %v628 = vpop.f32.mrb[0].mxu0
      %v629 = vadd.f32 %v579, %v628
      %v630 = vpop.f32.mrb[0].mxu0
      %631 = vdwg.mxu0
      %632 = vmax.xlane.f32.xlu0 %v626
      %v633 = vpop.xlane.xlu0 %632
      %634 = vmax.xlane.f32.xlu0 %v629
      %v635 = vpop.xlane.xlu0 %634
      %v636 = vsub.f32 %v626, %v633
      %v637 = vsub.f32 %v629, %v635
      %v638 = vmul.f32 %v636, 1.442695
      %v639 = vpow.pop %v638
      %v640 = vmul.f32 %v637, 1.442695
      %v641 = vpow.pop %v640
      %642 = vadd.xlane.f32.xlu0 %v639
      %v643 = vpop.xlane.xlu0 %642
      %644 = vadd.xlane.f32.xlu0 %v641
      %v645 = vpop.xlane.xlu0 %644
      %v646 = vrcp.pop %v643
      %v647 = vmul.f32 %v639, %v646
      %v648 = vrcp.pop %v645
      %v649 = vmul.f32 %v641, %v648
      %650 = vst [vmem:[%s334] sm:$0xff] %v647
      %651 = vst [vmem:[%s334 + $0x8] sm:$0xff] %v649
      %s652 = smul.u32 2, %s20
      %p653 = scmp.lt.s32.totalorder %s652, 5
      %s654 = scalar_select %p653, %s652, 5
      %s655 = smul.addr %s654, 8
      %s656 = scalar_lea.vmem %s9, %s655
      // Predicated region
      $region57: #{cause_specific_subnetwork.1} parent=55 // pred_check
        %p657 = pneg %p232
      $region58: #{cause_specific_subnetwork.1} parent=55 // pred_check_branch
        %659 = sbr.rel (%p657) target = $region60
      $region59: #{cause_specific_subnetwork.1} parent=55 // pred_region
        %s660 = smul.u32 2, %s20
      $region60: #{cause_specific_subnetwork.1} parent=55 // pred_fallthru
        _
    $region56: #{cause_specific_subnetwork.1} parent=5 // pred_fallthru
      _
    %p661 = scmp.le.s32.totalorder 2, %s15
    // Predicated region
    $region61: #{cause_specific_subnetwork.1} parent=5 // pred_check
      %p662 = pneg %p661
    $region62: #{cause_specific_subnetwork.1} parent=5 // pred_check_branch
      %664 = sbr.rel (%p662) target = $region64
    $region63: #{cause_specific_subnetwork.1} parent=5 // pred_region
      %s665 = ssub.s32 %s15, 2
      // Predicated region
      $region65: #{cause_specific_subnetwork.1} parent=63 // pred_check
        %p666 = pneg %p238
      $region66: #{cause_specific_subnetwork.1} parent=63 // pred_check_branch
        %668 = sbr.rel (%p666) target = $region68
      $region67: #{cause_specific_subnetwork.1} parent=63 // pred_region
        %s669 = smul.u32 2, %s21
        %p670 = scmp.lt.s32.totalorder %s669, 5
        %s671 = scalar_select %p670, %s669, 5
        %s672 = smul.addr %s671, 8
        %s673 = scalar_lea.vmem %s9, %s672
      $region68: #{cause_specific_subnetwork.1} parent=63 // pred_fallthru
        _
    $region64: #{cause_specific_subnetwork.1} parent=5 // pred_fallthru
      _
  $region6: #{cause_specific_subnetwork.1} parent=0 // loop_footer
    %s19 = sadd.s32 1, %s15
  $region7: #{cause_specific_subnetwork.1} parent=0 // loop_footer_branch
    %14 = sbr.rel target = $region3
  $region8: #{cause_specific_subnetwork.1} parent=0 // loop_exit
    _

</llo_original>
